<compile_context>
chip_gen: v5e
topology: v5e:2x2
jax: 0.10.0
libtpu: 0.0.40
codegen_flags: <defaults>
</compile_context>

<pallas_src>
import functools

import jax
import jax.numpy as jnp
from jax import lax
from jax.experimental import pallas as pl
from jax.experimental.pallas import tpu as pltpu


def _round_up(x, m):
    return ((x + m - 1) // m) * m


def _conv2d_same_kernel(x_ref, w_ref, b_ref, o_ref, xpad_ref, patch_ref,
                        *, H, W, KH, KW, C_pad, G, padl):
    """One block of G images per grid step.

    x_ref:     (G, C_pad, H*W)        NCHW input, channels zero-padded to C_pad (mult of 8)
    w_ref:     (C_out, KH*KW*C_pad)   folded tap-major weights (zero cols for pad channels)
    b_ref:     (C_out, 1)             bias
    o_ref:     (G, C_out, H*W)        conv output, channel-major, lane-dense
    xpad_ref:  (C_pad, H*W + 2*padl)  VMEM scratch: zero halo for 'same' padding
    patch_ref: (KH*KW*C_pad, G*H*W)   VMEM im2col patch, one aligned 8-row slot per tap
    """
    HW = H * W
    ph, pw = KH // 2, KW // 2

    # Halo-only zero fill: the interior [padl, padl+HW) is fully overwritten by
    # the per-image copy below, so only the two small halo strips need zeros.
    xpad_ref[:, :padl] = jnp.zeros((C_pad, padl), xpad_ref.dtype)
    xpad_ref[:, padl + HW:] = jnp.zeros((C_pad, padl), xpad_ref.dtype)

    # Hoisted column-wrap masks (row wrap is handled by the zero halo).
    col = lax.broadcasted_iota(jnp.int32, (1, HW), 1) % W
    col_ok = {}
    for dw in range(-pw, pw + 1):
        if dw != 0:
            col_ok[dw] = jnp.logical_and(col + dw >= 0, col + dw < W)

    # im2col: per image, drop the padded input into the halo buffer (aligned
    # 8-row store at lane offset padl, a multiple of 128), then write every
    # shifted tap view into its own aligned 8-row / 128-lane patch slot.
    for g in range(G):
        xpad_ref[:, padl:padl + HW] = x_ref[g]
        for kh in range(KH):
            for kw in range(KW):
                dh, dw = kh - ph, kw - pw
                start = padl + dh * W + dw                 # static offset
                piece = xpad_ref[:, start:start + HW]      # (C_pad, HW)
                if dw != 0:
                    piece = jnp.where(col_ok[dw], piece, 0.0)
                t = kh * KW + kw
                patch_ref[t * C_pad:(t + 1) * C_pad, g * HW:(g + 1) * HW] = piece

    # Single folded MXU matmul: (C_out, K) @ (K, G*HW).  If the wrapper passed
    # bf16 weights, the patch is cast to bf16 at the matmul only (f32 im2col).
    acc = jnp.dot(w_ref[...], patch_ref[...].astype(w_ref.dtype),
                  preferred_element_type=jnp.float32)
    acc = acc + b_ref[...]                                 # (C_out, 1) bcast over lanes
    for g in range(G):
        o_ref[g] = acc[:, g * HW:(g + 1) * HW].astype(o_ref.dtype)


def conv2d_same_pallas_nchw(x_nchw, w_oihw, bias, *, images_per_step=None,
                            use_bf16_mxu=False):
    """'same'-padded stride-1 2D conv, NCHW in / NCHW out (flattened H*W lanes)."""
    N, C_in, H, W = x_nchw.shape
    C_out, _, KH, KW = w_oihw.shape
    assert KH % 2 == 1 and KW % 2 == 1, "'same' via kernel//2 assumes odd kernels"
    HW = H * W
    assert HW % 128 == 0, "lane-dense layout assumes H*W multiple of 128"
    ph, pw = KH // 2, KW // 2
    # halo rounded up to a lane-tile multiple -> aligned interior store
    padl = _round_up(max(ph * W + pw, 1), 128)
    C_pad = _round_up(C_in, 8)                 # aligned 8-row tap slots in the patch

    # Images per grid step: widen the matmul/DMA lane width while keeping the
    # grid length >= 2 (v7x megacore: 2 TensorCores share the "parallel" axis).
    if images_per_step is None:
        images_per_step = 1
        for cand in (8, 4, 2):
            if N % cand == 0 and N // cand >= 2:
                images_per_step = cand
                break
    G = images_per_step
    assert N % G == 0

    x_flat = x_nchw.reshape(N, C_in, HW)                   # free reshape (contiguous)
    if C_pad != C_in:
        x_flat = jnp.pad(x_flat, ((0, 0), (0, C_pad - C_in), (0, 0)))

    # Folded weights: tap-major, channel-minor, channels zero-padded to C_pad.
    w_t = jnp.transpose(w_oihw, (0, 2, 3, 1))              # (C_out, KH, KW, C_in)
    if C_pad != C_in:
        w_t = jnp.pad(w_t, ((0, 0), (0, 0), (0, 0), (0, C_pad - C_in)))
    w2 = w_t.reshape(C_out, KH * KW * C_pad)
    if use_bf16_mxu:
        w2 = w2.astype(jnp.bfloat16)                       # MXU-native operands (v6e/v7x)
    b2 = bias.reshape(C_out, 1).astype(jnp.float32)

    kernel = functools.partial(
        _conv2d_same_kernel, H=H, W=W, KH=KH, KW=KW,
        C_pad=C_pad, G=G, padl=padl)

    out = pl.pallas_call(
        kernel,
        out_shape=jax.ShapeDtypeStruct((N, C_out, HW), x_nchw.dtype),
        grid_spec=pltpu.PrefetchScalarGridSpec(
            num_scalar_prefetch=0,
            grid=(N // G,),
            in_specs=[
                pl.BlockSpec((G, C_pad, HW), lambda n: (n, 0, 0)),
                pl.BlockSpec((C_out, KH * KW * C_pad), lambda n: (0, 0)),
                pl.BlockSpec((C_out, 1), lambda n: (0, 0)),
            ],
            out_specs=pl.BlockSpec((G, C_out, HW), lambda n: (n, 0, 0)),
            scratch_shapes=[
                pltpu.VMEM((C_pad, HW + 2 * padl), x_nchw.dtype),
                pltpu.VMEM((KH * KW * C_pad, G * HW), x_nchw.dtype),
            ],
        ),
        compiler_params=pltpu.CompilerParams(
            dimension_semantics=("parallel",)),
    )(x_flat, w2, b2)
    return out.reshape(N, C_out, H, W)                     # free reshape


def pixel_shuffle_nchw(x, r=2):
    """Exactly _pixel_shuffle (2D case): (N, C, H, W) -> (N, C/r^2, H*r, W*r)."""
    N, C, H, W = x.shape
    Co = C // (r * r)
    x = x.reshape(N, Co, r, r, H, W)
    x = jnp.transpose(x, (0, 1, 4, 2, 5, 3))               # == permute(0,1,4,2,5,3)
    return x.reshape(N, Co, H * r, W * r)


def pixel_shuffle_module_forward(x_nchw, w_oihw, bias, *, images_per_step=None,
                                 use_bf16_mxu=False):
    """Forward of the PixelShuffle module: conv (same pad, stride 1) + shuffle(2)."""
    y_nchw = conv2d_same_pallas_nchw(x_nchw, w_oihw, bias,
                                     images_per_step=images_per_step,
                                     use_bf16_mxu=use_bf16_mxu)
    return pixel_shuffle_nchw(y_nchw, r=2)


def icnr_init(key, c_out, c_in, k, r=2, scale=0.1):
    """ICNR(scale=2)-style init: sub-kernel replicated r^2 times over out-channels."""
    sub = jax.random.normal(key, (c_out // (r * r), c_in, k, k), jnp.float32) * scale
    return jnp.repeat(sub, r * r, axis=0)                  # (c_out, c_in, k, k)  OIHW


if __name__ == "__main__":
    key = jax.random.PRNGKey(0)
    k_x, k_w, k_b = jax.random.split(key, 3)

    N, C_in, H, W = 2, 4, 16, 16
    C_out, K, r = 8, 3, 2   # module: PixelShuffle(in_c=4, out_c=8, kernel=3, stride=1, d=2)

    x = jax.random.normal(k_x, (N, C_in, H, W), jnp.float32)
    w = icnr_init(k_w, C_out, C_in, K, r)
    b = jax.random.normal(k_b, (C_out,), jnp.float32) * 0.01

    def reference(xx):
        conv = lax.conv_general_dilated(
            xx, w, window_strides=(1, 1),
            padding=[(K // 2, K // 2), (K // 2, K // 2)],
            dimension_numbers=("NCHW", "OIHW", "NCHW"),
            precision=lax.Precision.HIGHEST) + b[None, :, None, None]
        return pixel_shuffle_nchw(conv, r)

    # ---- f32 MXU-operand path (module semantics), G=1 per step, grid of 2 ----
    fwd_f32 = jax.jit(functools.partial(pixel_shuffle_module_forward,
                                        use_bf16_mxu=False))
    out = jax.block_until_ready(fwd_f32(x, w, b))
    ref = reference(x)
    assert out.shape == (N, C_out // (r * r), H * r, W * r), out.shape
    assert jnp.allclose(out, ref, atol=1e-2, rtol=1e-2), \
        float(jnp.max(jnp.abs(out - ref)))

    # ---- bf16 MXU-operand path + 2 images per grid step (v6e/v7x recipe) ----
    N2 = 4
    x2 = jax.random.normal(k_x, (N2, C_in, H, W), jnp.float32)
    fwd_bf16 = jax.jit(functools.partial(pixel_shuffle_module_forward,
                                         use_bf16_mxu=True))
    out2 = jax.block_until_ready(fwd_bf16(x2, w, b))
    ref2 = reference(x2)
    assert out2.shape == (N2, C_out // (r * r), H * r, W * r), out2.shape
    assert jnp.allclose(out2, ref2, atol=5e-2, rtol=5e-2), \
        float(jnp.max(jnp.abs(out2 - ref2)))

    print("KERNEL_OK")
</pallas_src>

<mosaic_0001>
module attributes {stable_mosaic.version = 11 : i64} {
  func.func @_conv2d_same_kernel(%arg0: i32, %arg1: memref<1x8x256xf32, #tpu.memory_space<vmem>>, %arg2: memref<8x72xf32, #tpu.memory_space<vmem>>, %arg3: memref<8x1xf32, #tpu.memory_space<vmem>>, %arg4: memref<1x8x256xf32, #tpu.memory_space<vmem>>, %arg5: memref<8x512xf32, #tpu.memory_space<vmem>>, %arg6: memref<72x256xf32, #tpu.memory_space<vmem>>) attributes {dimension_semantics = [#tpu.dimension_semantics<parallel>], iteration_bounds = array<i64: 2>, scalar_prefetch = 0 : i64, scratch_operands = 2 : i64, tpu.core_type = #tpu.core_type<tc>, window_params = [{transform_indices = @transform_0, window_bounds = array<i64: 1, 8, 256>}, {pipeline_mode = #tpu.pipeline_mode<synchronous>, transform_indices = @transform_1, window_bounds = array<i64: 8, 72>}, {pipeline_mode = #tpu.pipeline_mode<synchronous>, transform_indices = @transform_2, window_bounds = array<i64: 8, 1>}, {transform_indices = @transform_3, window_bounds = array<i64: 1, 8, 256>}]} {
    %cst = arith.constant 0.000000e+00 : f32
    %0 = vector.broadcast %cst : f32 to vector<8x128xf32>
    %c0 = arith.constant 0 : index
    %c0_0 = arith.constant 0 : index
    %1 = vector.load %arg5[%c0, %c0_0] : memref<8x512xf32, #tpu.memory_space<vmem>>, vector<8x128xf32>
    tpu.vector_store %arg5[%c0, %c0_0], %0 {strides = array<i32>} : memref<8x512xf32, #tpu.memory_space<vmem>>, vector<8x128xf32>,
    %cst_1 = arith.constant 0.000000e+00 : f32
    %2 = vector.broadcast %cst_1 : f32 to vector<8x128xf32>
    %c0_2 = arith.constant 0 : index
    %c384 = arith.constant 384 : index
    %3 = vector.load %arg5[%c0_2, %c384] : memref<8x512xf32, #tpu.memory_space<vmem>>, vector<8x128xf32>
    tpu.vector_store %arg5[%c0_2, %c384], %2 {strides = array<i32>} : memref<8x512xf32, #tpu.memory_space<vmem>>, vector<8x128xf32>,
    %4 = tpu.iota {dimensions = array<i32: 1>} : vector<1x256xi32>
    %c16_i32 = arith.constant 16 : i32
    %c0_i32 = arith.constant 0 : i32
    %5 = arith.cmpi eq, %c16_i32, %c0_i32 : i32
    %c1_i32 = arith.constant 1 : i32
    %6 = arith.select %5, %c1_i32, %c16_i32 : i32
    %7 = vector.broadcast %6 : i32 to vector<1x256xi32>
    %8 = arith.remsi %4, %7 : vector<1x256xi32>
    %c0_i32_3 = arith.constant 0 : i32
    %9 = vector.broadcast %c0_i32_3 : i32 to vector<1x256xi32>
    %10 = arith.cmpi ne, %8, %9 : vector<1x256xi32>
    %c0_i32_4 = arith.constant 0 : i32
    %11 = vector.broadcast %c0_i32_4 : i32 to vector<1x256xi32>
    %12 = arith.cmpi slt, %8, %11 : vector<1x256xi32>
    %c0_i32_5 = arith.constant 0 : i32
    %13 = arith.cmpi slt, %6, %c0_i32_5 : i32
    %14 = vector.broadcast %13 : i1 to vector<1x256xi1>
    %15 = vector.broadcast %14 : vector<1x256xi1> to vector<1x256xi1>
    %16 = arith.xori %12, %15 : vector<1x256xi1>
    %17 = arith.andi %16, %10 : vector<1x256xi1>
    %18 = vector.broadcast %6 : i32 to vector<1x256xi32>
    %19 = arith.addi %8, %18 : vector<1x256xi32>
    %20 = arith.select %17, %19, %8 : vector<1x256xi1>, vector<1x256xi32>
    %c-1_i32 = arith.constant -1 : i32
    %21 = vector.broadcast %c-1_i32 : i32 to vector<1x256xi32>
    %22 = arith.addi %20, %21 : vector<1x256xi32>
    %c0_i32_6 = arith.constant 0 : i32
    %23 = vector.broadcast %c0_i32_6 : i32 to vector<1x256xi32>
    %24 = arith.cmpi sge, %22, %23 : vector<1x256xi32>
    %c-1_i32_7 = arith.constant -1 : i32
    %25 = vector.broadcast %c-1_i32_7 : i32 to vector<1x256xi32>
    %26 = arith.addi %20, %25 : vector<1x256xi32>
    %c16_i32_8 = arith.constant 16 : i32
    %27 = vector.broadcast %c16_i32_8 : i32 to vector<1x256xi32>
    %28 = arith.cmpi slt, %26, %27 : vector<1x256xi32>
    %29 = arith.andi %24, %28 : vector<1x256xi1>
    %c1_i32_9 = arith.constant 1 : i32
    %30 = vector.broadcast %c1_i32_9 : i32 to vector<1x256xi32>
    %31 = arith.addi %20, %30 : vector<1x256xi32>
    %c0_i32_10 = arith.constant 0 : i32
    %32 = vector.broadcast %c0_i32_10 : i32 to vector<1x256xi32>
    %33 = arith.cmpi sge, %31, %32 : vector<1x256xi32>
    %c1_i32_11 = arith.constant 1 : i32
    %34 = vector.broadcast %c1_i32_11 : i32 to vector<1x256xi32>
    %35 = arith.addi %20, %34 : vector<1x256xi32>
    %c16_i32_12 = arith.constant 16 : i32
    %36 = vector.broadcast %c16_i32_12 : i32 to vector<1x256xi32>
    %37 = arith.cmpi slt, %35, %36 : vector<1x256xi32>
    %38 = arith.andi %33, %37 : vector<1x256xi1>
    %c0_13 = arith.constant 0 : index
    %c0_14 = arith.constant 0 : index
    %c0_15 = arith.constant 0 : index
    %39 = vector.load %arg1[%c0_13, %c0_14, %c0_15] : memref<1x8x256xf32, #tpu.memory_space<vmem>>, vector<1x8x256xf32>
    %40 = vector.shape_cast %39 : vector<1x8x256xf32> to vector<8x256xf32>
    %c0_16 = arith.constant 0 : index
    %c128 = arith.constant 128 : index
    %41 = vector.load %arg5[%c0_16, %c128] : memref<8x512xf32, #tpu.memory_space<vmem>>, vector<8x256xf32>
    tpu.vector_store %arg5[%c0_16, %c128], %40 {strides = array<i32>} : memref<8x512xf32, #tpu.memory_space<vmem>>, vector<8x256xf32>,
    %c0_17 = arith.constant 0 : index
    %c111 = arith.constant 111 : index
    %42 = vector.load %arg5[%c0_17, %c111] : memref<8x512xf32, #tpu.memory_space<vmem>>, vector<8x256xf32>
    %cst_18 = arith.constant 0.000000e+00 : f32
    %43 = vector.shape_cast %29 : vector<1x256xi1> to vector<1x256xi1>
    %44 = vector.broadcast %43 : vector<1x256xi1> to vector<8x256xi1>
    %45 = vector.broadcast %cst_18 : f32 to vector<8x256xf32>
    %46 = arith.select %44, %42, %45 : vector<8x256xi1>, vector<8x256xf32>
    %c0_19 = arith.constant 0 : index
    %c0_20 = arith.constant 0 : index
    %47 = vector.load %arg6[%c0_19, %c0_20] : memref<72x256xf32, #tpu.memory_space<vmem>>, vector<8x256xf32>
    tpu.vector_store %arg6[%c0_19, %c0_20], %46 {strides = array<i32>} : memref<72x256xf32, #tpu.memory_space<vmem>>, vector<8x256xf32>,
    %c0_21 = arith.constant 0 : index
    %c112 = arith.constant 112 : index
    %48 = vector.load %arg5[%c0_21, %c112] : memref<8x512xf32, #tpu.memory_space<vmem>>, vector<8x256xf32>
    %c8 = arith.constant 8 : index
    %c0_22 = arith.constant 0 : index
    %49 = vector.load %arg6[%c8, %c0_22] : memref<72x256xf32, #tpu.memory_space<vmem>>, vector<8x256xf32>
    tpu.vector_store %arg6[%c8, %c0_22], %48 {strides = array<i32>} : memref<72x256xf32, #tpu.memory_space<vmem>>, vector<8x256xf32>,
    %c0_23 = arith.constant 0 : index
    %c113 = arith.constant 113 : index
    %50 = vector.load %arg5[%c0_23, %c113] : memref<8x512xf32, #tpu.memory_space<vmem>>, vector<8x256xf32>
    %cst_24 = arith.constant 0.000000e+00 : f32
    %51 = vector.shape_cast %38 : vector<1x256xi1> to vector<1x256xi1>
    %52 = vector.broadcast %51 : vector<1x256xi1> to vector<8x256xi1>
    %53 = vector.broadcast %cst_24 : f32 to vector<8x256xf32>
    %54 = arith.select %52, %50, %53 : vector<8x256xi1>, vector<8x256xf32>
    %c16 = arith.constant 16 : index
    %c0_25 = arith.constant 0 : index
    %55 = vector.load %arg6[%c16, %c0_25] : memref<72x256xf32, #tpu.memory_space<vmem>>, vector<8x256xf32>
    tpu.vector_store %arg6[%c16, %c0_25], %54 {strides = array<i32>} : memref<72x256xf32, #tpu.memory_space<vmem>>, vector<8x256xf32>,
    %c0_26 = arith.constant 0 : index
    %c127 = arith.constant 127 : index
    %56 = vector.load %arg5[%c0_26, %c127] : memref<8x512xf32, #tpu.memory_space<vmem>>, vector<8x256xf32>
    %cst_27 = arith.constant 0.000000e+00 : f32
    %57 = vector.shape_cast %29 : vector<1x256xi1> to vector<1x256xi1>
    %58 = vector.broadcast %57 : vector<1x256xi1> to vector<8x256xi1>
    %59 = vector.broadcast %cst_27 : f32 to vector<8x256xf32>
    %60 = arith.select %58, %56, %59 : vector<8x256xi1>, vector<8x256xf32>
    %c24 = arith.constant 24 : index
    %c0_28 = arith.constant 0 : index
    %61 = vector.load %arg6[%c24, %c0_28] : memref<72x256xf32, #tpu.memory_space<vmem>>, vector<8x256xf32>
    tpu.vector_store %arg6[%c24, %c0_28], %60 {strides = array<i32>} : memref<72x256xf32, #tpu.memory_space<vmem>>, vector<8x256xf32>,
    %c0_29 = arith.constant 0 : index
    %c128_30 = arith.constant 128 : index
    %62 = vector.load %arg5[%c0_29, %c128_30] : memref<8x512xf32, #tpu.memory_space<vmem>>, vector<8x256xf32>
    %c32 = arith.constant 32 : index
    %c0_31 = arith.constant 0 : index
    %63 = vector.load %arg6[%c32, %c0_31] : memref<72x256xf32, #tpu.memory_space<vmem>>, vector<8x256xf32>
    tpu.vector_store %arg6[%c32, %c0_31], %62 {strides = array<i32>} : memref<72x256xf32, #tpu.memory_space<vmem>>, vector<8x256xf32>,
    %c0_32 = arith.constant 0 : index
    %c129 = arith.constant 129 : index
    %64 = vector.load %arg5[%c0_32, %c129] : memref<8x512xf32, #tpu.memory_space<vmem>>, vector<8x256xf32>
    %cst_33 = arith.constant 0.000000e+00 : f32
    %65 = vector.shape_cast %38 : vector<1x256xi1> to vector<1x256xi1>
    %66 = vector.broadcast %65 : vector<1x256xi1> to vector<8x256xi1>
    %67 = vector.broadcast %cst_33 : f32 to vector<8x256xf32>
    %68 = arith.select %66, %64, %67 : vector<8x256xi1>, vector<8x256xf32>
    %c40 = arith.constant 40 : index
    %c0_34 = arith.constant 0 : index
    %69 = vector.load %arg6[%c40, %c0_34] : memref<72x256xf32, #tpu.memory_space<vmem>>, vector<8x256xf32>
    tpu.vector_store %arg6[%c40, %c0_34], %68 {strides = array<i32>} : memref<72x256xf32, #tpu.memory_space<vmem>>, vector<8x256xf32>,
    %c0_35 = arith.constant 0 : index
    %c143 = arith.constant 143 : index
    %70 = vector.load %arg5[%c0_35, %c143] : memref<8x512xf32, #tpu.memory_space<vmem>>, vector<8x256xf32>
    %cst_36 = arith.constant 0.000000e+00 : f32
    %71 = vector.shape_cast %29 : vector<1x256xi1> to vector<1x256xi1>
    %72 = vector.broadcast %71 : vector<1x256xi1> to vector<8x256xi1>
    %73 = vector.broadcast %cst_36 : f32 to vector<8x256xf32>
    %74 = arith.select %72, %70, %73 : vector<8x256xi1>, vector<8x256xf32>
    %c48 = arith.constant 48 : index
    %c0_37 = arith.constant 0 : index
    %75 = vector.load %arg6[%c48, %c0_37] : memref<72x256xf32, #tpu.memory_space<vmem>>, vector<8x256xf32>
    tpu.vector_store %arg6[%c48, %c0_37], %74 {strides = array<i32>} : memref<72x256xf32, #tpu.memory_space<vmem>>, vector<8x256xf32>,
    %c0_38 = arith.constant 0 : index
    %c144 = arith.constant 144 : index
    %76 = vector.load %arg5[%c0_38, %c144] : memref<8x512xf32, #tpu.memory_space<vmem>>, vector<8x256xf32>
    %c56 = arith.constant 56 : index
    %c0_39 = arith.constant 0 : index
    %77 = vector.load %arg6[%c56, %c0_39] : memref<72x256xf32, #tpu.memory_space<vmem>>, vector<8x256xf32>
    tpu.vector_store %arg6[%c56, %c0_39], %76 {strides = array<i32>} : memref<72x256xf32, #tpu.memory_space<vmem>>, vector<8x256xf32>,
    %c0_40 = arith.constant 0 : index
    %c145 = arith.constant 145 : index
    %78 = vector.load %arg5[%c0_40, %c145] : memref<8x512xf32, #tpu.memory_space<vmem>>, vector<8x256xf32>
    %cst_41 = arith.constant 0.000000e+00 : f32
    %79 = vector.shape_cast %38 : vector<1x256xi1> to vector<1x256xi1>
    %80 = vector.broadcast %79 : vector<1x256xi1> to vector<8x256xi1>
    %81 = vector.broadcast %cst_41 : f32 to vector<8x256xf32>
    %82 = arith.select %80, %78, %81 : vector<8x256xi1>, vector<8x256xf32>
    %c64 = arith.constant 64 : index
    %c0_42 = arith.constant 0 : index
    %83 = vector.load %arg6[%c64, %c0_42] : memref<72x256xf32, #tpu.memory_space<vmem>>, vector<8x256xf32>
    tpu.vector_store %arg6[%c64, %c0_42], %82 {strides = array<i32>} : memref<72x256xf32, #tpu.memory_space<vmem>>, vector<8x256xf32>,
    %c0_43 = arith.constant 0 : index
    %c0_44 = arith.constant 0 : index
    %84 = vector.load %arg2[%c0_43, %c0_44] : memref<8x72xf32, #tpu.memory_space<vmem>>, vector<8x72xf32>
    %c0_45 = arith.constant 0 : index
    %c0_46 = arith.constant 0 : index
    %85 = vector.load %arg6[%c0_45, %c0_46] : memref<72x256xf32, #tpu.memory_space<vmem>>, vector<72x256xf32>
    %cst_47 = arith.constant dense<0.000000e+00> : vector<8x256xf32>
    %86 = tpu.matmul %84, %85, %cst_47 {dimension_numbers = #tpu.dot_dimension_numbers<[1], [0], [0], [1], [0, 0, 1, 1], [], []>} : vector<8x72xf32>, vector<72x256xf32>, vector<8x256xf32> -> vector<8x256xf32>
    %c0_48 = arith.constant 0 : index
    %c0_49 = arith.constant 0 : index
    %87 = vector.load %arg3[%c0_48, %c0_49] : memref<8x1xf32, #tpu.memory_space<vmem>>, vector<8x1xf32>
    %88 = vector.broadcast %87 : vector<8x1xf32> to vector<8x256xf32>
    %89 = arith.addf %86, %88 : vector<8x256xf32>
    %c0_50 = arith.constant 0 : index
    %c0_51 = arith.constant 0 : index
    %c0_52 = arith.constant 0 : index
    %90 = vector.load %arg4[%c0_50, %c0_51, %c0_52] : memref<1x8x256xf32, #tpu.memory_space<vmem>>, vector<1x8x256xf32>
    %91 = vector.shape_cast %90 : vector<1x8x256xf32> to vector<8x256xf32>
    %92 = vector.shape_cast %89 : vector<8x256xf32> to vector<1x8x256xf32>
    tpu.vector_store %arg4[%c0_50, %c0_51, %c0_52], %92 {strides = array<i32>} : memref<1x8x256xf32, #tpu.memory_space<vmem>>, vector<1x8x256xf32>,
    return
  }
  func.func @transform_0(%arg0: i32) -> (i32, i32, i32) {
    %c0_i32 = arith.constant 0 : i32
    %c0_i32_0 = arith.constant 0 : i32
    %c0_i32_1 = arith.constant 0 : i32
    return %arg0, %c0_i32, %c0_i32_0 : i32, i32, i32
  }
  func.func @transform_1(%arg0: i32) -> (i32, i32) {
    %c0_i32 = arith.constant 0 : i32
    %c0_i32_0 = arith.constant 0 : i32
    %c0_i32_1 = arith.constant 0 : i32
    return %c0_i32, %c0_i32_0 : i32, i32
  }
  func.func @transform_2(%arg0: i32) -> (i32, i32) {
    %c0_i32 = arith.constant 0 : i32
    %c0_i32_0 = arith.constant 0 : i32
    %c0_i32_1 = arith.constant 0 : i32
    return %c0_i32, %c0_i32_0 : i32, i32
  }
  func.func @transform_3(%arg0: i32) -> (i32, i32, i32) {
    %c0_i32 = arith.constant 0 : i32
    %c0_i32_0 = arith.constant 0 : i32
    %c0_i32_1 = arith.constant 0 : i32
    return %arg0, %c0_i32, %c0_i32_0 : i32, i32, i32
  }
}

</mosaic_0001>

<llo_original>
// kernel: pixel_shuffle_module_forward.1
$region0: #{pixel_shuffle_module_forward.1}
  #allocation0 [shape = 'u32[]', space=smem, size = 0x4, offset = 0x4, fixed_abs, tag = 'smem constant byte address 0x4 - core index']
  #allocation1 [shape = 'u32[72,128]{1,0:T(1,128)}', space=vmem, size = 0x9000, scoped, tag = 'internal scratch']
  #allocation2 [shape = 'f32[8,512]{1,0:T(8,128)}', space=vmem, size = 0x4000, scoped, tag = 'scratch operand']
  #allocation3 [shape = 'f32[72,256]{1,0:T(8,128)}', space=vmem, size = 0x12000, scoped, tag = 'scratch operand']
  %s0 = inlined_call_operand.vmem [shape: f32[2,8,256], index: 0, kind: input, shape index: {}]
  %s1 = inlined_call_operand.vmem [shape: f32[8,72], index: 1, kind: input, shape index: {}]
  %s2 = inlined_call_operand.vmem [shape: f32[8,1], index: 2, kind: input, shape index: {}]
  %s3 = inlined_call_operand.vmem [shape: f32[2,8,256], index: 3, kind: output, shape index: {}]
  %s4 = sld [smem:[#allocation0]]
  $region45: #{pixel_shuffle_module_forward.1} parent=0
    _
  %s6 = ssub.s32 1, %s4
  %s7 = scalar_select 0, %s6, %s4
  loop: start=0, step=1, limit=4
  $region2: #{pixel_shuffle_module_forward.1} parent=0 // loop_pre_header
    _
  $region3: #{pixel_shuffle_module_forward.1} parent=0 // loop_header
    %s9 = sphi 0, %s13
    %p10 = scmp.ge.s32.totalorder %s9, 4
    %s19 = sphi 0, %s21
    %s22 = sphi 0, %s19
    %s23 = sphi 0, %s22
    %s39 = sphi 0, %s23
    %s43 = sphi 0, %s43
    %s45 = sphi 0, %s43
    %s46 = sphi 0, %s45
    %s60 = sphi 0, %s46
    %s64 = sphi 0, %s64
    %s66 = sphi 0, %s64
    %s67 = sphi 0, %s66
    %s81 = sphi 0, %s67
    %s87 = sphi 0, %s89
    %s90 = sphi 0, %s87
    %s91 = sphi 0, %s90
    %s107 = sphi 0, %s91
  $region4: #{pixel_shuffle_module_forward.1} parent=0 // loop_header_branch
    %12 = sbr.rel (%p10) target = $region8
  $region5: #{pixel_shuffle_module_forward.1} parent=0 // loop_body
    %s14 = ssub.s32 %s9, 1
    %s15 = ssub.s32 %s9, 2
    %s16 = sadd.s32 %s9, 1
    %s17 = ssub.s32 %s9, %s16
    %p18 = scmp.eq.s32.totalorder %s17, 0
    %s20 = sadd.s32 %s19, 1
    %s21 = scalar_select %p18, %s19, %s20
    %p24 = pneg %p18
    %p25 = scmp.eq.s32.totalorder %s9, 1
    %p26 = por %p24, %p25
    %p27 = scmp.ne.s32.totalorder %s19, %s22
    %p28 = scmp.eq.s32.totalorder %s9, 0
    %p29 = por %p27, %p28
    %p30 = scmp.ne.s32.totalorder %s19, %s22
    %p31 = scmp.eq.s32.totalorder %s14, 1
    %p32 = por %p30, %p31
    %p33 = scmp.ne.s32.totalorder %s22, %s23
    %p34 = scmp.eq.s32.totalorder %s14, 0
    %p35 = por %p33, %p34
    %p36 = scmp.ne.s32.totalorder %s22, %s23
    %p37 = scmp.eq.s32.totalorder %s15, 1
    %p38 = por %p36, %p37
    %p40 = scmp.ne.s32.totalorder %s23, %s39
    %p41 = scmp.eq.s32.totalorder %s15, 0
    %p42 = por %p40, %p41
    %s44 = sadd.s32 %s43, 1
    %p47 = scmp.eq.s32.totalorder %s9, 1
    %p48 = scmp.ne.s32.totalorder %s43, %s45
    %p49 = scmp.eq.s32.totalorder %s9, 0
    %p50 = por %p48, %p49
    %p51 = scmp.ne.s32.totalorder %s43, %s45
    %p52 = scmp.eq.s32.totalorder %s14, 1
    %p53 = por %p51, %p52
    %p54 = scmp.ne.s32.totalorder %s45, %s46
    %p55 = scmp.eq.s32.totalorder %s14, 0
    %p56 = por %p54, %p55
    %p57 = scmp.ne.s32.totalorder %s45, %s46
    %p58 = scmp.eq.s32.totalorder %s15, 1
    %p59 = por %p57, %p58
    %p61 = scmp.ne.s32.totalorder %s46, %s60
    %p62 = scmp.eq.s32.totalorder %s15, 0
    %p63 = por %p61, %p62
    %s65 = sadd.s32 %s64, 1
    %p68 = scmp.eq.s32.totalorder %s9, 1
    %p69 = scmp.ne.s32.totalorder %s64, %s66
    %p70 = scmp.eq.s32.totalorder %s9, 0
    %p71 = por %p69, %p70
    %p72 = scmp.ne.s32.totalorder %s64, %s66
    %p73 = scmp.eq.s32.totalorder %s14, 1
    %p74 = por %p72, %p73
    %p75 = scmp.ne.s32.totalorder %s66, %s67
    %p76 = scmp.eq.s32.totalorder %s14, 0
    %p77 = por %p75, %p76
    %p78 = scmp.ne.s32.totalorder %s66, %s67
    %p79 = scmp.eq.s32.totalorder %s15, 1
    %p80 = por %p78, %p79
    %p82 = scmp.ne.s32.totalorder %s67, %s81
    %p83 = scmp.eq.s32.totalorder %s15, 0
    %p84 = por %p82, %p83
    %s85 = ssub.s32 %s9, %s16
    %p86 = scmp.eq.s32.totalorder %s85, 0
    %s88 = sadd.s32 %s87, 1
    %s89 = scalar_select %p86, %s87, %s88
    %p92 = pneg %p86
    %p93 = scmp.eq.s32.totalorder %s9, 1
    %p94 = por %p92, %p93
    %p95 = scmp.ne.s32.totalorder %s87, %s90
    %p96 = scmp.eq.s32.totalorder %s9, 0
    %p97 = por %p95, %p96
    %p98 = scmp.ne.s32.totalorder %s87, %s90
    %p99 = scmp.eq.s32.totalorder %s14, 1
    %p100 = por %p98, %p99
    %p101 = scmp.ne.s32.totalorder %s90, %s91
    %p102 = scmp.eq.s32.totalorder %s14, 0
    %p103 = por %p101, %p102
    %p104 = scmp.ne.s32.totalorder %s90, %s91
    %p105 = scmp.eq.s32.totalorder %s15, 1
    %p106 = por %p104, %p105
    %p108 = scmp.ne.s32.totalorder %s91, %s107
    %p109 = scmp.eq.s32.totalorder %s15, 0
    %p110 = por %p108, %p109
    %p111 = scmp.le.s32.totalorder 1, %s9
    %p112 = scmp.lt.s32.totalorder %s9, 3
    %p113 = pnand %p111, %p112
    %p114 = pneg %p113
    // Predicated region
    $region9: #{pixel_shuffle_module_forward.1} parent=5 // pred_check
      _
    $region10: #{pixel_shuffle_module_forward.1} parent=5 // pred_check_branch
      %116 = sbr.rel (%p113) target = $region12
    $region11: #{pixel_shuffle_module_forward.1} parent=5 // pred_region
      %s117 = ssub.s32 %s9, 1
      // Predicated region
      $region13: #{pixel_shuffle_module_forward.1} parent=11 // pred_check
        %p118 = pneg %p56
      $region14: #{pixel_shuffle_module_forward.1} parent=11 // pred_check_branch
        %120 = sbr.rel (%p118) target = $region16
      $region15: #{pixel_shuffle_module_forward.1} parent=11 // pred_region
        _
      $region16: #{pixel_shuffle_module_forward.1} parent=11 // pred_fallthru
        _
      // Predicated region
      $region17: #{pixel_shuffle_module_forward.1} parent=11 // pred_check
        %p121 = pneg %p77
      $region18: #{pixel_shuffle_module_forward.1} parent=11 // pred_check_branch
        %123 = sbr.rel (%p121) target = $region20
      $region19: #{pixel_shuffle_module_forward.1} parent=11 // pred_region
        _
      $region20: #{pixel_shuffle_module_forward.1} parent=11 // pred_fallthru
        _
    $region12: #{pixel_shuffle_module_forward.1} parent=5 // pred_fallthru
      _
    %p124 = scmp.lt.s32.totalorder %s9, 2
    // Predicated region
    $region21: #{pixel_shuffle_module_forward.1} parent=5 // pred_check
      %p125 = pneg %p124
    $region22: #{pixel_shuffle_module_forward.1} parent=5 // pred_check_branch
      %127 = sbr.rel (%p125) target = $region24
    $region23: #{pixel_shuffle_module_forward.1} parent=5 // pred_region
      // Predicated region
      $region25: #{pixel_shuffle_module_forward.1} parent=23 // pred_check
        %p128 = pneg %p29
      $region26: #{pixel_shuffle_module_forward.1} parent=23 // pred_check_branch
        %130 = sbr.rel (%p128) target = $region28
      $region27: #{pixel_shuffle_module_forward.1} parent=23 // pred_region
        %p131 = scmp.lt.s32.totalorder %s9, 1
        %s132 = scalar_select %p131, %s9, 1
        %s133 = smul.addr %s132, 2
        %s134 = smul.addr %s133, 8
        %s135 = scalar_lea.vmem %s0, %s134
      $region28: #{pixel_shuffle_module_forward.1} parent=23 // pred_fallthru
        _
    $region24: #{pixel_shuffle_module_forward.1} parent=5 // pred_fallthru
      _
    %p136 = scmp.le.s32.totalorder 1, %s9
    %p137 = scmp.lt.s32.totalorder %s9, 3
    %p138 = pnand %p136, %p137
    %p139 = pneg %p138
    // Predicated region
    $region29: #{pixel_shuffle_module_forward.1} parent=5 // pred_check
      _
    $region30: #{pixel_shuffle_module_forward.1} parent=5 // pred_check_branch
      %141 = sbr.rel (%p138) target = $region32
    $region31: #{pixel_shuffle_module_forward.1} parent=5 // pred_region
      %s142 = ssub.s32 %s9, 1
      %p143 = scmp.lt.s32.totalorder %s14, 1
      %s144 = scalar_select %p143, %s14, 1
      %s145 = smul.addr %s144, 2
      %s146 = smul.addr %s145, 8
      %s147 = scalar_lea.vmem %s0, %s146
      %p148 = pneg %p35
      %p149 = pneg %p32
      %p150 = pneg %p56
      %p151 = pneg %p53
      %p152 = pneg %p77
      %p153 = pneg %p74
      %p154 = pneg %p103
      %p155 = pneg %p100
      %p156 = scmp.lt.s32.totalorder %s14, 1
      %s157 = scalar_select %p156, %s14, 1
      %s158 = smul.addr %s157, 2
      %s159 = smul.addr %s158, 8
      %s160 = scalar_lea.vmem %s3, %s159
      %p161 = scmp.lt.s32.totalorder %s14, 1
      %s162 = scalar_select %p161, %s14, 1
      %s163 = smul.addr %s162, 2
      %s164 = smul.addr %s163, 8
      %s165 = scalar_lea.vmem %s0, %s164
      %p166 = scmp.lt.s32.totalorder %s14, 1
      %s167 = scalar_select %p166, %s14, 1
      %s168 = smul.addr %s167, 2
      %s169 = smul.addr %s168, 8
      %s170 = scalar_lea.vmem %s3, %s169
      %171 = vst [vmem:[#allocation2] sm:$0xff] 0.0
      %172 = vst [vmem:[#allocation2 + $0x18] sm:$0xff] 0.0
      %v173 = vlaneseq
      %v174 = vand.u32 %v173, 127
      %v175 = vadd.s32 %v174, 128
      %vm176 = vcmp.lt.s32.totalorder %v174, 0
      %v177 = vsub.s32 0, %v174
      %v178 = vsel %vm176, %v177, %v174
      %v179 = vshrl.u32 %v178, 4
      %v180 = vand.u32 %v178, 15
      %v181 = vsub.s32 0, %v180
      %v182 = vsel %vm176, %v181, %v180
      %vm183 = vcmp.lt.s32.totalorder %v175, 0
      %v184 = vsub.s32 0, %v175
      %v185 = vsel %vm183, %v184, %v175
      %v186 = vshrl.u32 %v185, 4
      %v187 = vand.u32 %v185, 15
      %v188 = vsub.s32 0, %v187
      %v189 = vsel %vm183, %v188, %v187
      %vm190 = vcmp.ne.s32.totalorder %v182, 0
      %vm191 = vcmp.ne.s32.totalorder %v189, 0
      %vm192 = vcmp.lt.s32.totalorder %v182, 0
      %vm193 = vcmp.lt.s32.totalorder %v189, 0
      %vm194 = vmand %vm192, %vm190
      %vm195 = vmand %vm193, %vm191
      %v196 = vadd.s32 %v182, 16
      %v197 = vadd.s32 %v189, 16
      %v198 = vsel %vm194, %v196, %v182
      %v199 = vsel %vm195, %v197, %v189
      %v200 = vadd.s32 %v198, 4294967295
      %v201 = vadd.s32 %v199, 4294967295
      %vm202 = vcmp.ge.s32.totalorder %v200, 0
      %vm203 = vcmp.ge.s32.totalorder %v201, 0
      %vm204 = vcmp.lt.s32.totalorder %v200, 16
      %vm205 = vcmp.lt.s32.totalorder %v201, 16
      %vm206 = vmand %vm202, %vm204
      %vm207 = vmand %vm203, %vm205
      %v208 = vadd.s32 %v198, 1
      %v209 = vadd.s32 %v199, 1
      %vm210 = vcmp.ge.s32.totalorder %v208, 0
      %vm211 = vcmp.ge.s32.totalorder %v209, 0
      %vm212 = vcmp.lt.s32.totalorder %v208, 16
      %vm213 = vcmp.lt.s32.totalorder %v209, 16
      %vm214 = vmand %vm210, %vm212
      %vm215 = vmand %vm211, %vm213
      %v216 = vld [vmem:[%s165] sm:$0xff]
      %v217 = vld [vmem:[%s165 + $0x8] sm:$0xff]
      %218 = vst [vmem:[#allocation2 + $0x8] sm:$0xff] %v216
      %219 = vst [vmem:[#allocation2 + $0x10] sm:$0xff] %v217
      %v220 = vld [vmem:[#allocation2] sm:$0xff]
      %v221 = vld [vmem:[#allocation2 + $0x8] sm:$0xff]
      %v222 = vld [vmem:[#allocation2 + $0x10] sm:$0xff]
      %v223 = vsel %vm206, 1, 0
      %v224 = vsel %vm207, 1, 0
      %vm225 = vcmp.eq.s32.totalorder %v223, 1
      %vm226 = vcmp.eq.s32.totalorder %v224, 1
      %230 = vrot.lane.b32.xlu0 %v220, 17
      %v231 = vpop.permute.xlu0 %230
      %232 = vrot.lane.b32.xlu0 %v221, 17
      %v233 = vpop.permute.xlu0 %232
      %234 = vrot.lane.b32.xlu0 %v222, 17
      %v235 = vpop.permute.xlu0 %234
      %vm236 = vcmask 138240
      %v237 = vsel %vm236, %v231, %v233
      %v238 = vsel %vm236, %v233, %v235
      %v241 = vsel %vm225, %v237, 0.0
      %v242 = vsel %vm226, %v238, 0.0
      %243 = vst [vmem:[#allocation3] sm:$0xff] %v241
      %244 = vst [vmem:[#allocation3 + $0x8] sm:$0xff] %v242
      %v245 = vld [vmem:[#allocation2] sm:$0xff]
      %v246 = vld [vmem:[#allocation2 + $0x8] sm:$0xff]
      %v247 = vld [vmem:[#allocation2 + $0x10] sm:$0xff]
      %251 = vrot.lane.b32.xlu0 %v245, 16
      %v252 = vpop.permute.xlu0 %251
      %253 = vrot.lane.b32.xlu0 %v246, 16
      %v254 = vpop.permute.xlu0 %253
      %255 = vrot.lane.b32.xlu0 %v247, 16
      %v256 = vpop.permute.xlu0 %255
      %vm257 = vcmask 130048
      %v258 = vsel %vm257, %v252, %v254
      %v259 = vsel %vm257, %v254, %v256
      %262 = vst [vmem:[#allocation3 + $0x10] sm:$0xff] %v258
      %263 = vst [vmem:[#allocation3 + $0x18] sm:$0xff] %v259
      %v264 = vld [vmem:[#allocation2] sm:$0xff]
      %v265 = vld [vmem:[#allocation2 + $0x8] sm:$0xff]
      %v266 = vld [vmem:[#allocation2 + $0x10] sm:$0xff]
      %v267 = vsel %vm214, 1, 0
      %v268 = vsel %vm215, 1, 0
      %vm269 = vcmp.eq.s32.totalorder %v267, 1
      %vm270 = vcmp.eq.s32.totalorder %v268, 1
      %274 = vrot.lane.b32.xlu0 %v264, 15
      %v275 = vpop.permute.xlu0 %274
      %276 = vrot.lane.b32.xlu0 %v265, 15
      %v277 = vpop.permute.xlu0 %276
      %278 = vrot.lane.b32.xlu0 %v266, 15
      %v279 = vpop.permute.xlu0 %278
      %vm280 = vcmask 121856
      %v281 = vsel %vm280, %v275, %v277
      %v282 = vsel %vm280, %v277, %v279
      %v285 = vsel %vm269, %v281, 0.0
      %v286 = vsel %vm270, %v282, 0.0
      %287 = vst [vmem:[#allocation3 + $0x20] sm:$0xff] %v285
      %288 = vst [vmem:[#allocation3 + $0x28] sm:$0xff] %v286
      %v289 = vld [vmem:[#allocation2] sm:$0xff]
      %v290 = vld [vmem:[#allocation2 + $0x8] sm:$0xff]
      %v291 = vld [vmem:[#allocation2 + $0x10] sm:$0xff]
      %295 = vrot.lane.b32.xlu0 %v289, 1
      %v296 = vpop.permute.xlu0 %295
      %297 = vrot.lane.b32.xlu0 %v290, 1
      %v298 = vpop.permute.xlu0 %297
      %299 = vrot.lane.b32.xlu0 %v291, 1
      %v300 = vpop.permute.xlu0 %299
      %vm301 = vcmask 7168
      %v302 = vsel %vm301, %v296, %v298
      %v303 = vsel %vm301, %v298, %v300
      %v306 = vsel %vm225, %v302, 0.0
      %v307 = vsel %vm226, %v303, 0.0
      %308 = vst [vmem:[#allocation3 + $0x30] sm:$0xff] %v306
      %309 = vst [vmem:[#allocation3 + $0x38] sm:$0xff] %v307
      %v310 = vld [vmem:[#allocation2 + $0x8] sm:$0xff]
      %v311 = vld [vmem:[#allocation2 + $0x10] sm:$0xff]
      %312 = vst [vmem:[#allocation3 + $0x40] sm:$0xff] %v310
      %313 = vst [vmem:[#allocation3 + $0x48] sm:$0xff] %v311
      %v314 = vld [vmem:[#allocation2 + $0x8] sm:$0xff]
      %v315 = vld [vmem:[#allocation2 + $0x10] sm:$0xff]
      %v316 = vld [vmem:[#allocation2 + $0x18] sm:$0xff]
      %320 = vrot.lane.b32.xlu0 %v314, 127
      %v321 = vpop.permute.xlu0 %320
      %322 = vrot.lane.b32.xlu0 %v315, 127
      %v323 = vpop.permute.xlu0 %322
      %324 = vrot.lane.b32.xlu0 %v316, 127
      %v325 = vpop.permute.xlu0 %324
      %vm326 = vcmask 1039360
      %v327 = vsel %vm326, %v321, %v323
      %v328 = vsel %vm326, %v323, %v325
      %v331 = vsel %vm269, %v327, 0.0
      %v332 = vsel %vm270, %v328, 0.0
      %333 = vst [vmem:[#allocation3 + $0x50] sm:$0xff] %v331
      %334 = vst [vmem:[#allocation3 + $0x58] sm:$0xff] %v332
      %v335 = vld [vmem:[#allocation2 + $0x8] sm:$0xff]
      %v336 = vld [vmem:[#allocation2 + $0x10] sm:$0xff]
      %v337 = vld [vmem:[#allocation2 + $0x18] sm:$0xff]
      %341 = vrot.lane.b32.xlu0 %v335, 113
      %v342 = vpop.permute.xlu0 %341
      %343 = vrot.lane.b32.xlu0 %v336, 113
      %v344 = vpop.permute.xlu0 %343
      %345 = vrot.lane.b32.xlu0 %v337, 113
      %v346 = vpop.permute.xlu0 %345
      %vm347 = vcmask 924672
      %v348 = vsel %vm347, %v342, %v344
      %v349 = vsel %vm347, %v344, %v346
      %v352 = vsel %vm225, %v348, 0.0
      %v353 = vsel %vm226, %v349, 0.0
      %354 = vst [vmem:[#allocation3 + $0x60] sm:$0xff] %v352
      %355 = vst [vmem:[#allocation3 + $0x68] sm:$0xff] %v353
      %v356 = vld [vmem:[#allocation2 + $0x8] sm:$0xff]
      %v357 = vld [vmem:[#allocation2 + $0x10] sm:$0xff]
      %v358 = vld [vmem:[#allocation2 + $0x18] sm:$0xff]
      %362 = vrot.lane.b32.xlu0 %v356, 112
      %v363 = vpop.permute.xlu0 %362
      %364 = vrot.lane.b32.xlu0 %v357, 112
      %v365 = vpop.permute.xlu0 %364
      %366 = vrot.lane.b32.xlu0 %v358, 112
      %v367 = vpop.permute.xlu0 %366
      %vm368 = vcmask 916480
      %v369 = vsel %vm368, %v363, %v365
      %v370 = vsel %vm368, %v365, %v367
      %373 = vst [vmem:[#allocation3 + $0x70] sm:$0xff] %v369
      %374 = vst [vmem:[#allocation3 + $0x78] sm:$0xff] %v370
      %v375 = vld [vmem:[#allocation2 + $0x8] sm:$0xff]
      %v376 = vld [vmem:[#allocation2 + $0x10] sm:$0xff]
      %v377 = vld [vmem:[#allocation2 + $0x18] sm:$0xff]
      %381 = vrot.lane.b32.xlu0 %v375, 111
      %v382 = vpop.permute.xlu0 %381
      %383 = vrot.lane.b32.xlu0 %v376, 111
      %v384 = vpop.permute.xlu0 %383
      %385 = vrot.lane.b32.xlu0 %v377, 111
      %v386 = vpop.permute.xlu0 %385
      %vm387 = vcmask 908288
      %v388 = vsel %vm387, %v382, %v384
      %v389 = vsel %vm387, %v384, %v386
      %v392 = vsel %vm269, %v388, 0.0
      %v393 = vsel %vm270, %v389, 0.0
      %394 = vst [vmem:[#allocation3 + $0x80] sm:$0xff] %v392
      %395 = vst [vmem:[#allocation3 + $0x88] sm:$0xff] %v393
      %v396 = vld [vmem:[%s1] sm:$0xff]
      %v397 = vld [vmem:[#allocation3] sm:$0xff]
      %v398 = vld [vmem:[#allocation3 + $0x8] sm:$0xff]
      %v399 = vld [vmem:[#allocation3 + $0x10] sm:$0xff]
      %v400 = vld [vmem:[#allocation3 + $0x18] sm:$0xff]
      %v401 = vld [vmem:[#allocation3 + $0x20] sm:$0xff]
      %v402 = vld [vmem:[#allocation3 + $0x28] sm:$0xff]
      %v403 = vld [vmem:[#allocation3 + $0x30] sm:$0xff]
      %v404 = vld [vmem:[#allocation3 + $0x38] sm:$0xff]
      %v405 = vld [vmem:[#allocation3 + $0x40] sm:$0xff]
      %v406 = vld [vmem:[#allocation3 + $0x48] sm:$0xff]
      %v407 = vld [vmem:[#allocation3 + $0x50] sm:$0xff]
      %v408 = vld [vmem:[#allocation3 + $0x58] sm:$0xff]
      %v409 = vld [vmem:[#allocation3 + $0x60] sm:$0xff]
      %v410 = vld [vmem:[#allocation3 + $0x68] sm:$0xff]
      %v411 = vld [vmem:[#allocation3 + $0x70] sm:$0xff]
      %v412 = vld [vmem:[#allocation3 + $0x78] sm:$0xff]
      %v413 = vld [vmem:[#allocation3 + $0x80] sm:$0xff]
      %v414 = vld [vmem:[#allocation3 + $0x88] sm:$0xff]
      %v415 = vld [vmem:[%s2] sm:$0xff]
      %417 = vset.pattern.permute.xlu0 0
      %418 = vperm.xlu0 %417, %v415
      %v419 = vpop.permute.xlu0 %418
      %vm421 = vcmask 588800
      %v423 = vsel %vm421, %v396, 0
      %425 = vmatpush.msra.mxu0 0.0
      %426 = vmatpush.msra.mxu0 0.0
      %427 = vmatpush.msra.mxu0 0.0
      %428 = vmatpush.msra.mxu0 0.0
      %429 = vmatpush.msra.mxu0 0.0
      %430 = vmatpush.msra.mxu0 0.0
      %431 = vmatpush.msra.mxu0 0.0
      %432 = vmatpush.msra.mxu0 %v413
      %433 = vmatpush.msra.mxu0 %v411
      %434 = vmatpush.msra.mxu0 %v409
      %435 = vmatpush.msra.mxu0 %v407
      %436 = vmatpush.msra.mxu0 %v405
      %437 = vmatpush.msra.mxu0 %v403
      %438 = vmatpush.msra.mxu0 %v401
      %439 = vmatpush.msra.mxu0 %v399
      %440 = vmatpush.msra.mxu0 %v397
      %441 = vmatmul.f32.gmra.mxu0 %v423
      %v442 = vpop.f32.mrf.mxu0
      %v443 = vadd.f32 %v419, %v442
      %444 = vdwg.mxu0
      %445 = vmatpush.msra.mxu0 0.0
      %446 = vmatpush.msra.mxu0 0.0
      %447 = vmatpush.msra.mxu0 0.0
      %448 = vmatpush.msra.mxu0 0.0
      %449 = vmatpush.msra.mxu0 0.0
      %450 = vmatpush.msra.mxu0 0.0
      %451 = vmatpush.msra.mxu0 0.0
      %452 = vmatpush.msra.mxu0 %v414
      %453 = vmatpush.msra.mxu0 %v412
      %454 = vmatpush.msra.mxu0 %v410
      %455 = vmatpush.msra.mxu0 %v408
      %456 = vmatpush.msra.mxu0 %v406
      %457 = vmatpush.msra.mxu0 %v404
      %458 = vmatpush.msra.mxu0 %v402
      %459 = vmatpush.msra.mxu0 %v400
      %460 = vmatpush.msra.mxu0 %v398
      %461 = vmatmul.f32.gmra.mxu0 %v423
      %v462 = vpop.f32.mrf.mxu0
      %v463 = vadd.f32 %v419, %v462
      %464 = vdwg.mxu0
      %465 = vst [vmem:[%s170] sm:$0xff] %v443
      %466 = vst [vmem:[%s170 + $0x8] sm:$0xff] %v463
      %p467 = scmp.lt.s32.totalorder %s14, 1
      %s468 = scalar_select %p467, %s14, 1
      %s469 = smul.addr %s468, 2
      %s470 = smul.addr %s469, 8
      %s471 = scalar_lea.vmem %s3, %s470
      // Predicated region
      $region33: #{pixel_shuffle_module_forward.1} parent=31 // pred_check
        %p472 = pneg %p100
      $region34: #{pixel_shuffle_module_forward.1} parent=31 // pred_check_branch
        %474 = sbr.rel (%p472) target = $region36
      $region35: #{pixel_shuffle_module_forward.1} parent=31 // pred_region
        _
      $region36: #{pixel_shuffle_module_forward.1} parent=31 // pred_fallthru
        _
    $region32: #{pixel_shuffle_module_forward.1} parent=5 // pred_fallthru
      _
    %p475 = scmp.le.s32.totalorder 2, %s9
    // Predicated region
    $region37: #{pixel_shuffle_module_forward.1} parent=5 // pred_check
      %p476 = pneg %p475
    $region38: #{pixel_shuffle_module_forward.1} parent=5 // pred_check_branch
      %478 = sbr.rel (%p476) target = $region40
    $region39: #{pixel_shuffle_module_forward.1} parent=5 // pred_region
      %s479 = ssub.s32 %s9, 2
      // Predicated region
      $region41: #{pixel_shuffle_module_forward.1} parent=39 // pred_check
        %p480 = pneg %p106
      $region42: #{pixel_shuffle_module_forward.1} parent=39 // pred_check_branch
        %482 = sbr.rel (%p480) target = $region44
      $region43: #{pixel_shuffle_module_forward.1} parent=39 // pred_region
        %p483 = scmp.lt.s32.totalorder %s15, 1
        %s484 = scalar_select %p483, %s15, 1
        %s485 = smul.addr %s484, 2
        %s486 = smul.addr %s485, 8
        %s487 = scalar_lea.vmem %s3, %s486
      $region44: #{pixel_shuffle_module_forward.1} parent=39 // pred_fallthru
        _
    $region40: #{pixel_shuffle_module_forward.1} parent=5 // pred_fallthru
      _
  $region6: #{pixel_shuffle_module_forward.1} parent=0 // loop_footer
    %s13 = sadd.s32 1, %s9
  $region7: #{pixel_shuffle_module_forward.1} parent=0 // loop_footer_branch
    %8 = sbr.rel target = $region3
  $region8: #{pixel_shuffle_module_forward.1} parent=0 // loop_exit
    _

</llo_original>
